<compile_context>
chip_gen: v5e
topology: v5e:2x2
jax: 0.10.0
libtpu: 0.0.40
codegen_flags: <defaults>
</compile_context>

<pallas_src>
import functools

import jax
import jax.numpy as jnp
from jax.experimental import pallas as pl
from jax.experimental.pallas import tpu as pltpu

LEAKY_SLOPE = 0.01  # PyTorch nn.LeakyReLU default negative_slope


# ----------------------------- Pallas kernel ---------------------------------
def _mlp2_fused_kernel(x_ref, w_ref, b_ref, o_ref):
    """Whole MLP_2 forward on VMEM-resident tiles.

    x_ref: (B, D)         -- raw input, un-padded
    w_ref: (5, PAD, PAD)  -- all layer weights, zero-padded, (in, out) layout
    b_ref: (5, 1, PAD)    -- all layer biases, zero-padded
    o_ref: (B, PAD)       -- lane-dense output; cols >= num_classes are pad
    """
    d_in = x_ref.shape[1]

    # Layer 0: (B, D) @ (D, PAD).  Zero-padded weight columns + zero bias pad
    # keep every pad lane exactly 0 through all LeakyReLU layers, so the
    # padded lanes never contaminate the valid ones.
    y = jnp.dot(x_ref[...], w_ref[0, :d_in, :],
                preferred_element_type=jnp.float32) + b_ref[0]
    h = jnp.maximum(y, LEAKY_SLOPE * y)

    # Layers 1..3 (two more (D,D) layers + the (D, D/2) layer), unrolled.
    for i in range(1, 4):
        y = jnp.dot(h, w_ref[i], preferred_element_type=jnp.float32) + b_ref[i]
        h = jnp.maximum(y, LEAKY_SLOPE * y)

    # Final layer (D/2 -> num_classes) + Sigmoid; pad cols become sigmoid(0)=0.5
    # and are sliced off by the wrapper.
    y = jnp.dot(h, w_ref[4], preferred_element_type=jnp.float32) + b_ref[4]
    o_ref[...] = jax.nn.sigmoid(y).astype(o_ref.dtype)


# ------------------------------ forward pass ----------------------------------
@functools.partial(jax.jit, static_argnames=("num_classes",))
def mlp2_forward(x, w_all, b_all, *, num_classes):
    """MLP_2.forward as a single fused pallas_call; params already packed."""
    batch = x.shape[0]
    pad = w_all.shape[-1]
    vmem = pl.BlockSpec(memory_space=pltpu.MemorySpace.VMEM)
    out_pad = pl.pallas_call(
        _mlp2_fused_kernel,
        out_shape=jax.ShapeDtypeStruct((batch, pad), jnp.float32),
        in_specs=[vmem, vmem, vmem],
        out_specs=vmem,
    )(x, w_all, b_all)
    return out_pad[:, :num_classes]


# --------------------------- one-time param packing ---------------------------
def pack_mlp2_params(params):
    """Pack [(W, b)] * 5 (W stored (in, out)) into two lane-padded buffers.

    Done ONCE at init so the per-call forward path is only the pallas_call.
    """
    pad = 0
    for w, _ in params:
        pad = max(pad, w.shape[0], w.shape[1])
    pad = max(128, -(-pad // 128) * 128)          # round up to lane width
    n = len(params)
    w_all = jnp.zeros((n, pad, pad), jnp.float32)
    b_all = jnp.zeros((n, 1, pad), jnp.float32)
    for i, (w, b) in enumerate(params):
        din, dout = w.shape
        w_all = w_all.at[i, :din, :dout].set(w.astype(jnp.float32))
        b_all = b_all.at[i, 0, :dout].set(b.astype(jnp.float32))
    return jax.device_put(w_all), jax.device_put(b_all)


# ------------------------------ parameter init --------------------------------
def init_mlp2_params(key, input_size: int, num_classes: int = 1):
    """PyTorch-style U(-1/sqrt(fan_in), 1/sqrt(fan_in)); W stored as (in, out)."""
    half = int(input_size / 2)
    dims = [(input_size, input_size)] * 3 + [(input_size, half), (half, num_classes)]
    params = []
    for din, dout in dims:
        key, kw, kb = jax.random.split(key, 3)
        bound = 1.0 / float(din) ** 0.5
        w = jax.random.uniform(kw, (din, dout), jnp.float32, -bound, bound)
        b = jax.random.uniform(kb, (dout,), jnp.float32, -bound, bound)
        params.append((w, b))
    return params


# ---------------------------------- main ---------------------------------------
if __name__ == "__main__":
    key = jax.random.PRNGKey(0)
    batch = 8
    input_size = 32
    num_classes = 1

    k_x, k_p = jax.random.split(key)
    x = jax.random.normal(k_x, (batch, input_size), jnp.float32)
    params = init_mlp2_params(k_p, input_size, num_classes)

    # One-time packing (hoisted out of the per-call path).
    w_all, b_all = pack_mlp2_params(params)

    out = jax.block_until_ready(
        mlp2_forward(x, w_all, b_all, num_classes=num_classes))

    # Pure-JAX reference (same math as the PyTorch module).
    ref = x
    for i, (w, b) in enumerate(params):
        ref = ref @ w + b
        if i == len(params) - 1:
            ref = jax.nn.sigmoid(ref)
        else:
            ref = jnp.where(ref >= 0.0, ref, LEAKY_SLOPE * ref)

    assert out.shape == (batch, num_classes)
    assert jnp.allclose(out, ref, atol=1e-5, rtol=1e-5)

    print("KERNEL_OK")
</pallas_src>

<mosaic_0001>
module attributes {stable_mosaic.version = 11 : i64} {
  func.func @_mlp2_fused_kernel(%arg0: memref<8x32xf32, #tpu.memory_space<vmem>>, %arg1: memref<5x128x128xf32, #tpu.memory_space<vmem>>, %arg2: memref<5x1x128xf32, #tpu.memory_space<vmem>>, %arg3: memref<8x128xf32, #tpu.memory_space<vmem>>) attributes {dimension_semantics = [], scalar_prefetch = 0 : i64, scratch_operands = 0 : i64, tpu.core_type = #tpu.core_type<tc>} {
    %c0 = arith.constant 0 : index
    %c0_0 = arith.constant 0 : index
    %0 = vector.load %arg0[%c0, %c0_0] : memref<8x32xf32, #tpu.memory_space<vmem>>, vector<8x32xf32>
    %c0_1 = arith.constant 0 : index
    %c0_2 = arith.constant 0 : index
    %c0_3 = arith.constant 0 : index
    %1 = vector.load %arg1[%c0_1, %c0_2, %c0_3] : memref<5x128x128xf32, #tpu.memory_space<vmem>>, vector<1x32x128xf32>
    %2 = vector.shape_cast %1 : vector<1x32x128xf32> to vector<32x128xf32>
    %cst = arith.constant dense<0.000000e+00> : vector<8x128xf32>
    %3 = tpu.matmul %0, %2, %cst {dimension_numbers = #tpu.dot_dimension_numbers<[1], [0], [0], [1], [0, 0, 1, 1], [], []>} : vector<8x32xf32>, vector<32x128xf32>, vector<8x128xf32> -> vector<8x128xf32>
    %c0_4 = arith.constant 0 : index
    %c0_5 = arith.constant 0 : index
    %c0_6 = arith.constant 0 : index
    %4 = vector.load %arg2[%c0_4, %c0_5, %c0_6] : memref<5x1x128xf32, #tpu.memory_space<vmem>>, vector<1x1x128xf32>
    %5 = vector.shape_cast %4 : vector<1x1x128xf32> to vector<1x128xf32>
    %6 = vector.broadcast %5 : vector<1x128xf32> to vector<8x128xf32>
    %7 = arith.addf %3, %6 : vector<8x128xf32>
    %cst_7 = arith.constant 0.00999999977 : f32
    %8 = vector.broadcast %cst_7 : f32 to vector<8x128xf32>
    %9 = arith.mulf %8, %7 : vector<8x128xf32>
    %10 = arith.maximumf %7, %9 : vector<8x128xf32>
    %c1 = arith.constant 1 : index
    %c0_8 = arith.constant 0 : index
    %c0_9 = arith.constant 0 : index
    %11 = vector.load %arg1[%c1, %c0_8, %c0_9] : memref<5x128x128xf32, #tpu.memory_space<vmem>>, vector<1x128x128xf32>
    %12 = vector.shape_cast %11 : vector<1x128x128xf32> to vector<128x128xf32>
    %cst_10 = arith.constant dense<0.000000e+00> : vector<8x128xf32>
    %13 = tpu.matmul %10, %12, %cst_10 {dimension_numbers = #tpu.dot_dimension_numbers<[1], [0], [0], [1], [0, 0, 1, 1], [], []>} : vector<8x128xf32>, vector<128x128xf32>, vector<8x128xf32> -> vector<8x128xf32>
    %c1_11 = arith.constant 1 : index
    %c0_12 = arith.constant 0 : index
    %c0_13 = arith.constant 0 : index
    %14 = vector.load %arg2[%c1_11, %c0_12, %c0_13] : memref<5x1x128xf32, #tpu.memory_space<vmem>>, vector<1x1x128xf32>
    %15 = vector.shape_cast %14 : vector<1x1x128xf32> to vector<1x128xf32>
    %16 = vector.broadcast %15 : vector<1x128xf32> to vector<8x128xf32>
    %17 = arith.addf %13, %16 : vector<8x128xf32>
    %cst_14 = arith.constant 0.00999999977 : f32
    %18 = vector.broadcast %cst_14 : f32 to vector<8x128xf32>
    %19 = arith.mulf %18, %17 : vector<8x128xf32>
    %20 = arith.maximumf %17, %19 : vector<8x128xf32>
    %c2 = arith.constant 2 : index
    %c0_15 = arith.constant 0 : index
    %c0_16 = arith.constant 0 : index
    %21 = vector.load %arg1[%c2, %c0_15, %c0_16] : memref<5x128x128xf32, #tpu.memory_space<vmem>>, vector<1x128x128xf32>
    %22 = vector.shape_cast %21 : vector<1x128x128xf32> to vector<128x128xf32>
    %cst_17 = arith.constant dense<0.000000e+00> : vector<8x128xf32>
    %23 = tpu.matmul %20, %22, %cst_17 {dimension_numbers = #tpu.dot_dimension_numbers<[1], [0], [0], [1], [0, 0, 1, 1], [], []>} : vector<8x128xf32>, vector<128x128xf32>, vector<8x128xf32> -> vector<8x128xf32>
    %c2_18 = arith.constant 2 : index
    %c0_19 = arith.constant 0 : index
    %c0_20 = arith.constant 0 : index
    %24 = vector.load %arg2[%c2_18, %c0_19, %c0_20] : memref<5x1x128xf32, #tpu.memory_space<vmem>>, vector<1x1x128xf32>
    %25 = vector.shape_cast %24 : vector<1x1x128xf32> to vector<1x128xf32>
    %26 = vector.broadcast %25 : vector<1x128xf32> to vector<8x128xf32>
    %27 = arith.addf %23, %26 : vector<8x128xf32>
    %cst_21 = arith.constant 0.00999999977 : f32
    %28 = vector.broadcast %cst_21 : f32 to vector<8x128xf32>
    %29 = arith.mulf %28, %27 : vector<8x128xf32>
    %30 = arith.maximumf %27, %29 : vector<8x128xf32>
    %c3 = arith.constant 3 : index
    %c0_22 = arith.constant 0 : index
    %c0_23 = arith.constant 0 : index
    %31 = vector.load %arg1[%c3, %c0_22, %c0_23] : memref<5x128x128xf32, #tpu.memory_space<vmem>>, vector<1x128x128xf32>
    %32 = vector.shape_cast %31 : vector<1x128x128xf32> to vector<128x128xf32>
    %cst_24 = arith.constant dense<0.000000e+00> : vector<8x128xf32>
    %33 = tpu.matmul %30, %32, %cst_24 {dimension_numbers = #tpu.dot_dimension_numbers<[1], [0], [0], [1], [0, 0, 1, 1], [], []>} : vector<8x128xf32>, vector<128x128xf32>, vector<8x128xf32> -> vector<8x128xf32>
    %c3_25 = arith.constant 3 : index
    %c0_26 = arith.constant 0 : index
    %c0_27 = arith.constant 0 : index
    %34 = vector.load %arg2[%c3_25, %c0_26, %c0_27] : memref<5x1x128xf32, #tpu.memory_space<vmem>>, vector<1x1x128xf32>
    %35 = vector.shape_cast %34 : vector<1x1x128xf32> to vector<1x128xf32>
    %36 = vector.broadcast %35 : vector<1x128xf32> to vector<8x128xf32>
    %37 = arith.addf %33, %36 : vector<8x128xf32>
    %cst_28 = arith.constant 0.00999999977 : f32
    %38 = vector.broadcast %cst_28 : f32 to vector<8x128xf32>
    %39 = arith.mulf %38, %37 : vector<8x128xf32>
    %40 = arith.maximumf %37, %39 : vector<8x128xf32>
    %c4 = arith.constant 4 : index
    %c0_29 = arith.constant 0 : index
    %c0_30 = arith.constant 0 : index
    %41 = vector.load %arg1[%c4, %c0_29, %c0_30] : memref<5x128x128xf32, #tpu.memory_space<vmem>>, vector<1x128x128xf32>
    %42 = vector.shape_cast %41 : vector<1x128x128xf32> to vector<128x128xf32>
    %cst_31 = arith.constant dense<0.000000e+00> : vector<8x128xf32>
    %43 = tpu.matmul %40, %42, %cst_31 {dimension_numbers = #tpu.dot_dimension_numbers<[1], [0], [0], [1], [0, 0, 1, 1], [], []>} : vector<8x128xf32>, vector<128x128xf32>, vector<8x128xf32> -> vector<8x128xf32>
    %c4_32 = arith.constant 4 : index
    %c0_33 = arith.constant 0 : index
    %c0_34 = arith.constant 0 : index
    %44 = vector.load %arg2[%c4_32, %c0_33, %c0_34] : memref<5x1x128xf32, #tpu.memory_space<vmem>>, vector<1x1x128xf32>
    %45 = vector.shape_cast %44 : vector<1x1x128xf32> to vector<1x128xf32>
    %46 = vector.broadcast %45 : vector<1x128xf32> to vector<8x128xf32>
    %47 = arith.addf %43, %46 : vector<8x128xf32>
    %48 = arith.negf %47 : vector<8x128xf32>
    %49 = math.exp %48 : vector<8x128xf32>
    %cst_35 = arith.constant 1.000000e+00 : f32
    %50 = vector.broadcast %cst_35 : f32 to vector<8x128xf32>
    %51 = arith.addf %50, %49 : vector<8x128xf32>
    %52 = arith.divf %50, %51 : vector<8x128xf32>
    %c0_36 = arith.constant 0 : index
    %c0_37 = arith.constant 0 : index
    %53 = vector.load %arg3[%c0_36, %c0_37] : memref<8x128xf32, #tpu.memory_space<vmem>>, vector<8x128xf32>
    tpu.vector_store %arg3[%c0_36, %c0_37], %52 {strides = array<i32>} : memref<8x128xf32, #tpu.memory_space<vmem>>, vector<8x128xf32>,
    return
  }
}

</mosaic_0001>

<llo_original>
// kernel: mlp2_forward.1
$region0: #{mlp2_forward.1}
  #allocation0 [shape = 'u32[]', space=smem, size = 0x4, offset = 0x4, fixed_abs, tag = 'smem constant byte address 0x4 - core index']
  #allocation1 [shape = 'u32[72,128]{1,0:T(1,128)}', space=vmem, size = 0x9000, scoped, tag = 'internal scratch']
  %s0 = inlined_call_operand.hbm [shape: f32[8,32], index: 0, kind: input, shape index: {}]
  %s1 = inlined_call_operand.hbm [shape: f32[5,128,128], index: 1, kind: input, shape index: {}]
  %s2 = inlined_call_operand.hbm [shape: f32[5,1,128], index: 2, kind: input, shape index: {}]
  %s3 = inlined_call_operand.vmem [shape: f32[8,128], index: 3, kind: output, shape index: {}]
  %s4 = sld [smem:[#allocation0]]
  $region34: #{mlp2_forward.1} parent=0
    _
  %s6 = ssub.s32 1, %s4
  %s7 = scalar_select 0, %s6, %s4
  $region1: #{mlp2_forward.1} parent=0
    #allocation2 [shape = 'u8[4096]{0}', space=vmem, size = 0x1000, scoped, tag = 'input window, operand 0, single buffered']
    #allocation3 [shape = 's32[1]{0}', space=sflag, size = 0x4, scoped, tag = 'scoped memory for mlp2_forward.1']
    #allocation4 [shape = 'u8[327680]{0}', space=vmem, size = 0x50000, scoped, tag = 'input window, operand 1, single buffered']
    #allocation5 [shape = 's32[1]{0}', space=sflag, size = 0x4, scoped, tag = 'scoped memory for mlp2_forward.1']
    #allocation6 [shape = 'u8[2560]{0}', space=vmem, size = 0xc00, scoped, tag = 'input window, operand 2, single buffered']
    %8 = vsyncpa [#allocation3], 0
    %9 = vsyncpa [#allocation5], 0
    // Predicated region
    $region2: #{mlp2_forward.1} parent=1 // pred_check
      _
    $region3: #{mlp2_forward.1} parent=1 // pred_check_branch
      %11 = sbr.rel (0) target = $region5
    $region4: #{mlp2_forward.1} parent=1 // pred_region
      %13 = vsyncadd [#allocation3], 0
      %s15 = sshll.u32 %s0, 4
      %s16 = int_to_ptr.hbm [resolvable:$true] %s15
      %s17 = sshll.u32 [#allocation2], 4
      %s18 = int_to_ptr.vmem [resolvable:$true] %s17
      %20 = dma.hbm_to_vmem [thread:$0]  %s16, 128, %s18, [#allocation3]
    $region5: #{mlp2_forward.1} parent=1 // pred_fallthru
      _
    // Predicated region
    $region6: #{mlp2_forward.1} parent=1 // pred_check
      _
    $region7: #{mlp2_forward.1} parent=1 // pred_check_branch
      %22 = sbr.rel (0) target = $region9
    $region8: #{mlp2_forward.1} parent=1 // pred_region
      %24 = vsyncadd [#allocation5], 0
      %s25 = sshll.u32 %s1, 4
      %s26 = int_to_ptr.hbm [resolvable:$true] %s25
      %s27 = sshll.u32 [#allocation4], 4
      %s28 = int_to_ptr.vmem [resolvable:$true] %s27
      %33 = dma.hbm_to_vmem [thread:$0]  %s26, 10240, %s28, [#allocation5], 128, 128, 8
    $region9: #{mlp2_forward.1} parent=1 // pred_fallthru
      _
    // Predicated region
    $region10: #{mlp2_forward.1} parent=1 // pred_check
      _
    $region11: #{mlp2_forward.1} parent=1 // pred_check_branch
      %35 = sbr.rel (0) target = $region13
    $region12: #{mlp2_forward.1} parent=1 // pred_region
      %37 = vsyncadd [#allocation5], 0
      %s38 = sshll.u32 %s2, 4
      %s39 = int_to_ptr.hbm [resolvable:$true] %s38
      %s40 = sshll.u32 [#allocation6], 4
      %s41 = int_to_ptr.vmem [resolvable:$true] %s40
      %46 = dma.hbm_to_vmem [thread:$0]  %s39, 80, %s41, [#allocation5], 16, 16, 1
    $region13: #{mlp2_forward.1} parent=1 // pred_fallthru
      _
    // Predicated region
    $region14: #{mlp2_forward.1} parent=1 // pred_check
      _
    $region15: #{mlp2_forward.1} parent=1 // pred_check_branch
      %48 = sbr.rel (0) target = $region17
    $region16: #{mlp2_forward.1} parent=1 // pred_region
      %50 = dma.done [#allocation3], 128
    $region17: #{mlp2_forward.1} parent=1 // pred_fallthru
      _
    // Predicated region
    $region18: #{mlp2_forward.1} parent=1 // pred_check
      _
    $region19: #{mlp2_forward.1} parent=1 // pred_check_branch
      %52 = sbr.rel (0) target = $region21
    $region20: #{mlp2_forward.1} parent=1 // pred_region
      %54 = dma.done [#allocation5], 10240
    $region21: #{mlp2_forward.1} parent=1 // pred_fallthru
      _
    // Predicated region
    $region22: #{mlp2_forward.1} parent=1 // pred_check
      _
    $region23: #{mlp2_forward.1} parent=1 // pred_check_branch
      %56 = sbr.rel (0) target = $region25
    $region24: #{mlp2_forward.1} parent=1 // pred_region
      %58 = dma.done [#allocation5], 80
    $region25: #{mlp2_forward.1} parent=1 // pred_fallthru
      _
    %v59 = vld [vmem:[#allocation2] sm:$0xff]
    %v60 = vld [vmem:[#allocation4] sm:$0xff]
    %v61 = vld [vmem:[#allocation4 + $0x8] sm:$0xff]
    %v62 = vld [vmem:[#allocation4 + $0x10] sm:$0xff]
    %v63 = vld [vmem:[#allocation4 + $0x18] sm:$0xff]
    %v64 = vld [vmem:[#allocation6] sm:$0x1]
    %v66 = vperm.slane %v64, 0
    %vm68 = vcmask 261120
    %v70 = vsel %vm68, %v59, 0
    %72 = vmatpush.msra.mxu0 0.0
    %73 = vmatpush.msra.mxu0 0.0
    %74 = vmatpush.msra.mxu0 0.0
    %75 = vmatpush.msra.mxu0 0.0
    %76 = vmatpush.msra.mxu0 0.0
    %77 = vmatpush.msra.mxu0 0.0
    %78 = vmatpush.msra.mxu0 0.0
    %79 = vmatpush.msra.mxu0 0.0
    %80 = vmatpush.msra.mxu0 0.0
    %81 = vmatpush.msra.mxu0 0.0
    %82 = vmatpush.msra.mxu0 0.0
    %83 = vmatpush.msra.mxu0 0.0
    %84 = vmatpush.msra.mxu0 %v63
    %85 = vmatpush.msra.mxu0 %v62
    %86 = vmatpush.msra.mxu0 %v61
    %87 = vmatpush.msra.mxu0 %v60
    %88 = vmatmul.f32.gmra.mxu0 %v70
    %v89 = vpop.f32.mrf.mxu0
    %v90 = vadd.f32 %v66, %v89
    %91 = vdwg.mxu0
    %v92 = vmul.f32 %v90, 0.01
    %v93 = vmax.f32 %v90, %v92
    %s94 = scalar_lea.vmem [#allocation4], 128
    %v95 = vld [vmem:[%s94] sm:$0xff]
    %v96 = vld [vmem:[%s94 + $0x8] sm:$0xff]
    %v97 = vld [vmem:[%s94 + $0x10] sm:$0xff]
    %v98 = vld [vmem:[%s94 + $0x18] sm:$0xff]
    %v99 = vld [vmem:[%s94 + $0x20] sm:$0xff]
    %v100 = vld [vmem:[%s94 + $0x28] sm:$0xff]
    %v101 = vld [vmem:[%s94 + $0x30] sm:$0xff]
    %v102 = vld [vmem:[%s94 + $0x38] sm:$0xff]
    %v103 = vld [vmem:[%s94 + $0x40] sm:$0xff]
    %v104 = vld [vmem:[%s94 + $0x48] sm:$0xff]
    %v105 = vld [vmem:[%s94 + $0x50] sm:$0xff]
    %v106 = vld [vmem:[%s94 + $0x58] sm:$0xff]
    %v107 = vld [vmem:[%s94 + $0x60] sm:$0xff]
    %v108 = vld [vmem:[%s94 + $0x68] sm:$0xff]
    %v109 = vld [vmem:[%s94 + $0x70] sm:$0xff]
    %v110 = vld [vmem:[%s94 + $0x78] sm:$0xff]
    %s111 = scalar_lea.vmem [#allocation6], 1
    %v112 = vld [vmem:[%s111] sm:$0x1]
    %v114 = vperm.slane %v112, 0
    %116 = vmatpush.msra.mxu0 %v110
    %117 = vmatpush.msra.mxu0 %v109
    %118 = vmatpush.msra.mxu0 %v108
    %119 = vmatpush.msra.mxu0 %v107
    %120 = vmatpush.msra.mxu0 %v106
    %121 = vmatpush.msra.mxu0 %v105
    %122 = vmatpush.msra.mxu0 %v104
    %123 = vmatpush.msra.mxu0 %v103
    %124 = vmatpush.msra.mxu0 %v102
    %125 = vmatpush.msra.mxu0 %v101
    %126 = vmatpush.msra.mxu0 %v100
    %127 = vmatpush.msra.mxu0 %v99
    %128 = vmatpush.msra.mxu0 %v98
    %129 = vmatpush.msra.mxu0 %v97
    %130 = vmatpush.msra.mxu0 %v96
    %131 = vmatpush.msra.mxu0 %v95
    %132 = vmatmul.f32.gmra.mxu0 %v93
    %v133 = vpop.f32.mrf.mxu0
    %v134 = vadd.f32 %v114, %v133
    %135 = vdwg.mxu0
    %v136 = vmul.f32 %v134, 0.01
    %v137 = vmax.f32 %v134, %v136
    %s138 = scalar_lea.vmem [#allocation4], 256
    %v139 = vld [vmem:[%s138] sm:$0xff]
    %v140 = vld [vmem:[%s138 + $0x8] sm:$0xff]
    %v141 = vld [vmem:[%s138 + $0x10] sm:$0xff]
    %v142 = vld [vmem:[%s138 + $0x18] sm:$0xff]
    %v143 = vld [vmem:[%s138 + $0x20] sm:$0xff]
    %v144 = vld [vmem:[%s138 + $0x28] sm:$0xff]
    %v145 = vld [vmem:[%s138 + $0x30] sm:$0xff]
    %v146 = vld [vmem:[%s138 + $0x38] sm:$0xff]
    %v147 = vld [vmem:[%s138 + $0x40] sm:$0xff]
    %v148 = vld [vmem:[%s138 + $0x48] sm:$0xff]
    %v149 = vld [vmem:[%s138 + $0x50] sm:$0xff]
    %v150 = vld [vmem:[%s138 + $0x58] sm:$0xff]
    %v151 = vld [vmem:[%s138 + $0x60] sm:$0xff]
    %v152 = vld [vmem:[%s138 + $0x68] sm:$0xff]
    %v153 = vld [vmem:[%s138 + $0x70] sm:$0xff]
    %v154 = vld [vmem:[%s138 + $0x78] sm:$0xff]
    %s155 = scalar_lea.vmem [#allocation6], 2
    %v156 = vld [vmem:[%s155] sm:$0x1]
    %v158 = vperm.slane %v156, 0
    %160 = vmatpush.msra.mxu0 %v154
    %161 = vmatpush.msra.mxu0 %v153
    %162 = vmatpush.msra.mxu0 %v152
    %163 = vmatpush.msra.mxu0 %v151
    %164 = vmatpush.msra.mxu0 %v150
    %165 = vmatpush.msra.mxu0 %v149
    %166 = vmatpush.msra.mxu0 %v148
    %167 = vmatpush.msra.mxu0 %v147
    %168 = vmatpush.msra.mxu0 %v146
    %169 = vmatpush.msra.mxu0 %v145
    %170 = vmatpush.msra.mxu0 %v144
    %171 = vmatpush.msra.mxu0 %v143
    %172 = vmatpush.msra.mxu0 %v142
    %173 = vmatpush.msra.mxu0 %v141
    %174 = vmatpush.msra.mxu0 %v140
    %175 = vmatpush.msra.mxu0 %v139
    %176 = vmatmul.f32.gmra.mxu0 %v137
    %v177 = vpop.f32.mrf.mxu0
    %v178 = vadd.f32 %v158, %v177
    %179 = vdwg.mxu0
    %v180 = vmul.f32 %v178, 0.01
    %v181 = vmax.f32 %v178, %v180
    %s182 = scalar_lea.vmem [#allocation4], 384
    %v183 = vld [vmem:[%s182] sm:$0xff]
    %v184 = vld [vmem:[%s182 + $0x8] sm:$0xff]
    %v185 = vld [vmem:[%s182 + $0x10] sm:$0xff]
    %v186 = vld [vmem:[%s182 + $0x18] sm:$0xff]
    %v187 = vld [vmem:[%s182 + $0x20] sm:$0xff]
    %v188 = vld [vmem:[%s182 + $0x28] sm:$0xff]
    %v189 = vld [vmem:[%s182 + $0x30] sm:$0xff]
    %v190 = vld [vmem:[%s182 + $0x38] sm:$0xff]
    %v191 = vld [vmem:[%s182 + $0x40] sm:$0xff]
    %v192 = vld [vmem:[%s182 + $0x48] sm:$0xff]
    %v193 = vld [vmem:[%s182 + $0x50] sm:$0xff]
    %v194 = vld [vmem:[%s182 + $0x58] sm:$0xff]
    %v195 = vld [vmem:[%s182 + $0x60] sm:$0xff]
    %v196 = vld [vmem:[%s182 + $0x68] sm:$0xff]
    %v197 = vld [vmem:[%s182 + $0x70] sm:$0xff]
    %v198 = vld [vmem:[%s182 + $0x78] sm:$0xff]
    %s199 = scalar_lea.vmem [#allocation6], 3
    %v200 = vld [vmem:[%s199] sm:$0x1]
    %v202 = vperm.slane %v200, 0
    %204 = vmatpush.msra.mxu0 %v198
    %205 = vmatpush.msra.mxu0 %v197
    %206 = vmatpush.msra.mxu0 %v196
    %207 = vmatpush.msra.mxu0 %v195
    %208 = vmatpush.msra.mxu0 %v194
    %209 = vmatpush.msra.mxu0 %v193
    %210 = vmatpush.msra.mxu0 %v192
    %211 = vmatpush.msra.mxu0 %v191
    %212 = vmatpush.msra.mxu0 %v190
    %213 = vmatpush.msra.mxu0 %v189
    %214 = vmatpush.msra.mxu0 %v188
    %215 = vmatpush.msra.mxu0 %v187
    %216 = vmatpush.msra.mxu0 %v186
    %217 = vmatpush.msra.mxu0 %v185
    %218 = vmatpush.msra.mxu0 %v184
    %219 = vmatpush.msra.mxu0 %v183
    %220 = vmatmul.f32.gmra.mxu0 %v181
    %v221 = vpop.f32.mrf.mxu0
    %v222 = vadd.f32 %v202, %v221
    %223 = vdwg.mxu0
    %v224 = vmul.f32 %v222, 0.01
    %v225 = vmax.f32 %v222, %v224
    %s226 = scalar_lea.vmem [#allocation4], 512
    %v227 = vld [vmem:[%s226] sm:$0xff]
    %v228 = vld [vmem:[%s226 + $0x8] sm:$0xff]
    %v229 = vld [vmem:[%s226 + $0x10] sm:$0xff]
    %v230 = vld [vmem:[%s226 + $0x18] sm:$0xff]
    %v231 = vld [vmem:[%s226 + $0x20] sm:$0xff]
    %v232 = vld [vmem:[%s226 + $0x28] sm:$0xff]
    %v233 = vld [vmem:[%s226 + $0x30] sm:$0xff]
    %v234 = vld [vmem:[%s226 + $0x38] sm:$0xff]
    %v235 = vld [vmem:[%s226 + $0x40] sm:$0xff]
    %v236 = vld [vmem:[%s226 + $0x48] sm:$0xff]
    %v237 = vld [vmem:[%s226 + $0x50] sm:$0xff]
    %v238 = vld [vmem:[%s226 + $0x58] sm:$0xff]
    %v239 = vld [vmem:[%s226 + $0x60] sm:$0xff]
    %v240 = vld [vmem:[%s226 + $0x68] sm:$0xff]
    %v241 = vld [vmem:[%s226 + $0x70] sm:$0xff]
    %v242 = vld [vmem:[%s226 + $0x78] sm:$0xff]
    %s243 = scalar_lea.vmem [#allocation6], 4
    %v244 = vld [vmem:[%s243] sm:$0x1]
    %v246 = vperm.slane %v244, 0
    %248 = vmatpush.msra.mxu0 %v242
    %249 = vmatpush.msra.mxu0 %v241
    %250 = vmatpush.msra.mxu0 %v240
    %251 = vmatpush.msra.mxu0 %v239
    %252 = vmatpush.msra.mxu0 %v238
    %253 = vmatpush.msra.mxu0 %v237
    %254 = vmatpush.msra.mxu0 %v236
    %255 = vmatpush.msra.mxu0 %v235
    %256 = vmatpush.msra.mxu0 %v234
    %257 = vmatpush.msra.mxu0 %v233
    %258 = vmatpush.msra.mxu0 %v232
    %259 = vmatpush.msra.mxu0 %v231
    %260 = vmatpush.msra.mxu0 %v230
    %261 = vmatpush.msra.mxu0 %v229
    %262 = vmatpush.msra.mxu0 %v228
    %263 = vmatpush.msra.mxu0 %v227
    %264 = vmatmul.f32.gmra.mxu0 %v225
    %v265 = vpop.f32.mrf.mxu0
    %v266 = vadd.f32 %v246, %v265
    %267 = vdwg.mxu0
    %v268 = vxor.u32 %v266, 2147483648
    %v269 = vmul.f32 %v268, 1.442695
    %v270 = vpow.pop %v269
    %v271 = vadd.f32 %v270, 1.0
    %v272 = vrcp.pop %v271
    %v273 = vmul.f32 %v271, %v272
    %v274 = vsub.f32 1.0, %v273
    %v275 = vmul.f32 %v272, %v274
    %v276 = vadd.f32 %v272, %v275
    %vm277 = vweird.f32 %v271
    %vm278 = vweird.f32 %v272
    %vm279 = vmor %vm277, %vm278
    %v280 = vsel %vm279, %v272, %v276
    %v281 = vand.u32 2147483647, %v271
    %vm282 = vcmp.eq.f32.partialorder %v281, 8.507059e+37
    %v283 = vand.u32 %v271, 2147483648
    %v284 = vor.u32 1.1754944e-38, %v283
    %v285 = vsel %vm282, %v284, %v280
    %v286 = vmul.f32 1.0, %v285
    %287 = vst [vmem:[%s3] sm:$0xff] %v286
    // Predicated region
    $region26: #{mlp2_forward.1} parent=1 // pred_check
      _
    $region27: #{mlp2_forward.1} parent=1 // pred_check_branch
      %289 = sbr.rel (0) target = $region29
    $region28: #{mlp2_forward.1} parent=1 // pred_region
      _
    $region29: #{mlp2_forward.1} parent=1 // pred_fallthru
      _
    // Predicated region
    $region30: #{mlp2_forward.1} parent=1 // pred_check
      _
    $region31: #{mlp2_forward.1} parent=1 // pred_check_branch
      %291 = sbr.rel (0) target = $region33
    $region32: #{mlp2_forward.1} parent=1 // pred_region
      _
    $region33: #{mlp2_forward.1} parent=1 // pred_fallthru
      _
    %292 = vsyncpa [#allocation3], 1
    %293 = vsyncpa [#allocation5], 1

</llo_original>
